<compile_context>
chip_gen: v6e
topology: v6e:2x2x1
jax: 0.10.0
libtpu: 0.0.40
codegen_flags: <defaults>
</compile_context>

<pallas_src>
import jax
import jax.numpy as jnp
from jax.experimental import pallas as pl
from jax.experimental.pallas import tpu as pltpu


def _round_down(n, m):
    return (n // m) * m


def agent_kernel(x_ref, w1_ref, b1_ref, w2t_ref, b2t_ref, out_ref):
    # ---- layer 1: Linear(in_shape, 32) + LeakyReLU(0.3), batch-major ----
    x = x_ref[...]                                                  # (TB, D_in) f32
    h = jnp.dot(x, w1_ref[...], preferred_element_type=jnp.float32)
    h = h + b1_ref[...]                                             # (1, 32) broadcast
    h = jnp.maximum(h, 0.3 * h)                                     # LeakyReLU(0.3)

    # ---- switch to feature-major for layer 2 / softmax / output ----
    h_t = h.T                                                       # (32, TB) XLU transpose
    logits_t = jnp.dot(w2t_ref[...], h_t,
                       preferred_element_type=jnp.float32)          # (n_out, TB)
    logits_t = logits_t + b2t_ref[...]                              # (n_out, 1) broadcast

    n_out = out_ref.shape[0]
    if n_out == 2:
        # softmax([l0, l1]) == [1 - sigmoid(l1 - l0), sigmoid(l1 - l0)]
        d = logits_t[1:2, :] - logits_t[0:1, :]                     # (1, TB)
        p1 = 1.0 / (1.0 + jnp.exp(-d))                              # stable, exact norm
        out_ref[...] = jnp.concatenate([1.0 - p1, p1], axis=0)
    else:
        m = jnp.max(logits_t, axis=0, keepdims=True)
        e = jnp.exp(logits_t - m)
        out_ref[...] = e / jnp.sum(e, axis=0, keepdims=True)        # exact division


def agent_forward(x, w1, b1, w2, b2, *, block_b=8192):
    """Forward pass. x: (B, D_in) f32. Returns (B, n_out) f32 softmax probs."""
    B, d_in = x.shape
    hidden = w1.shape[1]
    n_out = w2.shape[1]

    b1 = b1.reshape(1, hidden)
    w2_t = w2.T                              # (n_out, hidden)
    b2_t = b2.reshape(n_out, 1)              # (n_out, 1)

    def call(xp, tb, grid_n):
        return pl.pallas_call(
            agent_kernel,
            out_shape=jax.ShapeDtypeStruct((n_out, tb * grid_n), jnp.float32),
            grid=(grid_n,),
            in_specs=[
                pl.BlockSpec((tb, d_in), lambda i: (i, 0)),          # x streams by batch
                pl.BlockSpec((d_in, hidden), lambda i: (0, 0)),      # weights stay resident
                pl.BlockSpec((1, hidden), lambda i: (0, 0)),
                pl.BlockSpec((n_out, hidden), lambda i: (0, 0)),
                pl.BlockSpec((n_out, 1), lambda i: (0, 0)),
            ],
            out_specs=pl.BlockSpec((n_out, tb), lambda i: (0, i)),   # lane-dense output
            compiler_params=pltpu.CompilerParams(
                dimension_semantics=("parallel",),                   # 2 TCs on v7x
                vmem_limit_bytes=40 * 1024 * 1024,                   # fits v5e/v6e/v7x
            ),
        )(xp, w1, b1, w2_t, b2_t)

    if B <= 256:
        # Single tile; block shape equals the full array so no alignment
        # constraints and no padding are needed.
        out_t = call(x, B, 1)
    else:
        # Multi-tile: tile must be a multiple of 128 so the lane-dense
        # (n_out, tb) output block satisfies the (8, 128) rule.  Aim for at
        # least 2 tiles so the "parallel" axis can use both v7x TensorCores.
        block_b_eff = max(128, _round_down(block_b, 128))
        tb = min(block_b_eff, max(128, _round_down(pl.cdiv(B, 2), 128)))
        main = _round_down(B, tb)
        parts = [call(x, tb, main // tb)]                 # in-bounds tiles over x[:main]
        if main < B:
            tail = B - main
            parts.append(call(x[main:], tail, 1))         # small tail, single tile
        out_t = parts[0] if len(parts) == 1 else jnp.concatenate(parts, axis=1)

    return out_t.T                                        # (B, n_out)


def init_params(key, in_shape, hidden=32, num_outputs=2):
    # Mimics PyTorch Linear's uniform(-k, k), k = 1/sqrt(fan_in).
    k1, k2, k3, k4 = jax.random.split(key, 4)
    lim1 = 1.0 / jnp.sqrt(jnp.float32(in_shape))
    lim2 = 1.0 / jnp.sqrt(jnp.float32(hidden))
    w1 = jax.random.uniform(k1, (in_shape, hidden), jnp.float32, -lim1, lim1)
    b1 = jax.random.uniform(k2, (1, hidden), jnp.float32, -lim1, lim1)
    w2 = jax.random.uniform(k3, (hidden, num_outputs), jnp.float32, -lim2, lim2)
    b2 = jax.random.uniform(k4, (1, num_outputs), jnp.float32, -lim2, lim2)
    return w1, b1, w2, b2


if __name__ == "__main__":
    key = jax.random.PRNGKey(0)
    k_x, k_p, k_x2 = jax.random.split(key, 3)

    in_shape, hidden, num_outputs = 16, 32, 2
    w1, b1, w2, b2 = init_params(k_p, in_shape, hidden, num_outputs)

    def ref_forward(x):
        h = x @ w1 + b1
        h = jnp.where(h >= 0, h, 0.3 * h)
        return jax.nn.softmax(h @ w2 + b2, axis=1)

    # Case 1: tiny batch (single tile, grid=(1,)).
    x_small = jax.random.normal(k_x, (8, in_shape), jnp.float32)
    out_small = jax.block_until_ready(agent_forward(x_small, w1, b1, w2, b2))
    assert out_small.shape == (8, num_outputs)
    assert jnp.allclose(out_small, ref_forward(x_small), atol=2e-3, rtol=2e-3)
    assert jnp.allclose(jnp.sum(out_small, axis=1), 1.0, atol=1e-3)

    # Case 2: batch not divisible by the tile -> multi-tile main grid + tail call.
    x_big = jax.random.normal(k_x2, (300, in_shape), jnp.float32)
    out_big = jax.block_until_ready(agent_forward(x_big, w1, b1, w2, b2, block_b=128))
    assert out_big.shape == (300, num_outputs)
    assert jnp.allclose(out_big, ref_forward(x_big), atol=2e-3, rtol=2e-3)
    assert jnp.allclose(jnp.sum(out_big, axis=1), 1.0, atol=1e-3)

    print("KERNEL_OK")
</pallas_src>

<mosaic_0001>
module attributes {stable_mosaic.version = 11 : i64} {
  func.func @agent_kernel(%arg0: i32, %arg1: memref<8x16xf32, #tpu.memory_space<vmem>>, %arg2: memref<16x32xf32, #tpu.memory_space<vmem>>, %arg3: memref<1x32xf32, #tpu.memory_space<vmem>>, %arg4: memref<2x32xf32, #tpu.memory_space<vmem>>, %arg5: memref<2x1xf32, #tpu.memory_space<vmem>>, %arg6: memref<2x8xf32, #tpu.memory_space<vmem>>) attributes {dimension_semantics = [#tpu.dimension_semantics<parallel>], iteration_bounds = array<i64: 1>, scalar_prefetch = 0 : i64, scratch_operands = 0 : i64, tpu.core_type = #tpu.core_type<tc>, window_params = [{transform_indices = @transform_0, window_bounds = array<i64: 8, 16>}, {pipeline_mode = #tpu.pipeline_mode<synchronous>, transform_indices = @transform_1, window_bounds = array<i64: 16, 32>}, {pipeline_mode = #tpu.pipeline_mode<synchronous>, transform_indices = @transform_2, window_bounds = array<i64: 1, 32>}, {pipeline_mode = #tpu.pipeline_mode<synchronous>, transform_indices = @transform_3, window_bounds = array<i64: 2, 32>}, {pipeline_mode = #tpu.pipeline_mode<synchronous>, transform_indices = @transform_4, window_bounds = array<i64: 2, 1>}, {transform_indices = @transform_5, window_bounds = array<i64: 2, 8>}]} {
    %c0 = arith.constant 0 : index
    %c0_0 = arith.constant 0 : index
    %0 = vector.load %arg1[%c0, %c0_0] : memref<8x16xf32, #tpu.memory_space<vmem>>, vector<8x16xf32>
    %c0_1 = arith.constant 0 : index
    %c0_2 = arith.constant 0 : index
    %1 = vector.load %arg2[%c0_1, %c0_2] : memref<16x32xf32, #tpu.memory_space<vmem>>, vector<16x32xf32>
    %cst = arith.constant dense<0.000000e+00> : vector<8x32xf32>
    %2 = tpu.matmul %0, %1, %cst {dimension_numbers = #tpu.dot_dimension_numbers<[1], [0], [0], [1], [0, 0, 1, 1], [], []>} : vector<8x16xf32>, vector<16x32xf32>, vector<8x32xf32> -> vector<8x32xf32>
    %c0_3 = arith.constant 0 : index
    %c0_4 = arith.constant 0 : index
    %3 = vector.load %arg3[%c0_3, %c0_4] : memref<1x32xf32, #tpu.memory_space<vmem>>, vector<1x32xf32>
    %4 = vector.broadcast %3 : vector<1x32xf32> to vector<8x32xf32>
    %5 = arith.addf %2, %4 : vector<8x32xf32>
    %cst_5 = arith.constant 3.000000e-01 : f32
    %6 = vector.broadcast %cst_5 : f32 to vector<8x32xf32>
    %7 = arith.mulf %6, %5 : vector<8x32xf32>
    %8 = arith.maximumf %5, %7 : vector<8x32xf32>
    %9 = tpu.transpose %8, [1, 0] : vector<8x32xf32> -> vector<32x8xf32>
    %c0_6 = arith.constant 0 : index
    %c0_7 = arith.constant 0 : index
    %10 = vector.load %arg4[%c0_6, %c0_7] : memref<2x32xf32, #tpu.memory_space<vmem>>, vector<2x32xf32>
    %cst_8 = arith.constant dense<0.000000e+00> : vector<2x8xf32>
    %11 = tpu.matmul %10, %9, %cst_8 {dimension_numbers = #tpu.dot_dimension_numbers<[1], [0], [0], [1], [0, 0, 1, 1], [], []>} : vector<2x32xf32>, vector<32x8xf32>, vector<2x8xf32> -> vector<2x8xf32>
    %c0_9 = arith.constant 0 : index
    %c0_10 = arith.constant 0 : index
    %12 = vector.load %arg5[%c0_9, %c0_10] : memref<2x1xf32, #tpu.memory_space<vmem>>, vector<2x1xf32>
    %13 = vector.broadcast %12 : vector<2x1xf32> to vector<2x8xf32>
    %14 = arith.addf %11, %13 : vector<2x8xf32>
    %15 = vector.extract_strided_slice %14 {offsets = [1, 0], sizes = [1, 8], strides = [1, 1]} : vector<2x8xf32> to vector<1x8xf32>
    %16 = vector.extract_strided_slice %14 {offsets = [0, 0], sizes = [1, 8], strides = [1, 1]} : vector<2x8xf32> to vector<1x8xf32>
    %17 = arith.subf %15, %16 : vector<1x8xf32>
    %cst_11 = arith.constant 0.000000e+00 : f32
    %18 = vector.broadcast %cst_11 : f32 to vector<1x8xf32>
    %19 = arith.subf %18, %17 : vector<1x8xf32>
    %20 = math.exp %19 : vector<1x8xf32>
    %cst_12 = arith.constant 1.000000e+00 : f32
    %21 = vector.broadcast %cst_12 : f32 to vector<1x8xf32>
    %22 = arith.addf %21, %20 : vector<1x8xf32>
    %cst_13 = arith.constant 1.000000e+00 : f32
    %23 = vector.broadcast %cst_13 : f32 to vector<1x8xf32>
    %24 = arith.divf %23, %22 : vector<1x8xf32>
    %cst_14 = arith.constant 1.000000e+00 : f32
    %25 = vector.broadcast %cst_14 : f32 to vector<1x8xf32>
    %26 = arith.subf %25, %24 : vector<1x8xf32>
    %27 = tpu.concatenate %26, %24 in 0 : vector<1x8xf32>, vector<1x8xf32> -> vector<2x8xf32>
    %c0_15 = arith.constant 0 : index
    %c0_16 = arith.constant 0 : index
    %28 = vector.load %arg6[%c0_15, %c0_16] : memref<2x8xf32, #tpu.memory_space<vmem>>, vector<2x8xf32>
    tpu.vector_store %arg6[%c0_15, %c0_16], %27 {strides = array<i32>} : memref<2x8xf32, #tpu.memory_space<vmem>>, vector<2x8xf32>,
    return
  }
  func.func @transform_0(%arg0: i32) -> (i32, i32) {
    %c0_i32 = arith.constant 0 : i32
    %c0_i32_0 = arith.constant 0 : i32
    return %arg0, %c0_i32 : i32, i32
  }
  func.func @transform_1(%arg0: i32) -> (i32, i32) {
    %c0_i32 = arith.constant 0 : i32
    %c0_i32_0 = arith.constant 0 : i32
    %c0_i32_1 = arith.constant 0 : i32
    return %c0_i32, %c0_i32_0 : i32, i32
  }
  func.func @transform_2(%arg0: i32) -> (i32, i32) {
    %c0_i32 = arith.constant 0 : i32
    %c0_i32_0 = arith.constant 0 : i32
    %c0_i32_1 = arith.constant 0 : i32
    return %c0_i32, %c0_i32_0 : i32, i32
  }
  func.func @transform_3(%arg0: i32) -> (i32, i32) {
    %c0_i32 = arith.constant 0 : i32
    %c0_i32_0 = arith.constant 0 : i32
    %c0_i32_1 = arith.constant 0 : i32
    return %c0_i32, %c0_i32_0 : i32, i32
  }
  func.func @transform_4(%arg0: i32) -> (i32, i32) {
    %c0_i32 = arith.constant 0 : i32
    %c0_i32_0 = arith.constant 0 : i32
    %c0_i32_1 = arith.constant 0 : i32
    return %c0_i32, %c0_i32_0 : i32, i32
  }
  func.func @transform_5(%arg0: i32) -> (i32, i32) {
    %c0_i32 = arith.constant 0 : i32
    %c0_i32_0 = arith.constant 0 : i32
    return %c0_i32, %arg0 : i32, i32
  }
}

</mosaic_0001>

<llo_original>
// kernel: tpu_custom_call.1
$region0: #{tpu_custom_call.1}
  #allocation0 [shape = 'u32[]', space=smem, size = 0x4, offset = 0x4, fixed_abs, tag = 'smem constant byte address 0x4 - core index']
  #allocation1 [shape = 'u32[144,128]{1,0:T(1,128)}', space=vmem, size = 0x12000, scoped, tag = 'internal scratch']
  %s0 = inlined_call_operand.hbm [shape: f32[8,16], index: 0, kind: input, shape index: {}]
  %s1 = inlined_call_operand.hbm [shape: f32[16,32], index: 1, kind: input, shape index: {}]
  %s2 = inlined_call_operand.vmem [shape: f32[1,32], index: 2, kind: input, shape index: {}]
  %s3 = inlined_call_operand.vmem [shape: f32[2,32], index: 3, kind: input, shape index: {}]
  %s4 = inlined_call_operand.vmem [shape: f32[2,1], index: 4, kind: input, shape index: {}]
  %s5 = inlined_call_operand.hbm [shape: f32[2,8], index: 5, kind: output, shape index: {}]
  %s6 = sld [smem:[#allocation0]]
  $region38: #{tpu_custom_call.1} parent=0
    _
  %s8 = ssub.s32 1, %s6
  %s9 = scalar_select 0, %s8, %s6
  $region1: #{tpu_custom_call.1} parent=0
    #allocation2 [shape = 'u8[4096]{0}', space=vmem, size = 0x1000, scoped, tag = 'input window, operand 0, single buffered']
    #allocation3 [shape = 's32[1]{0}', space=sflag, size = 0x4, scoped, tag = 'scoped memory for tpu_custom_call.1']
    #allocation4 [shape = 's32[1]{0}', space=sflag, size = 0x4, scoped, tag = 'scoped memory for tpu_custom_call.1']
    #allocation5 [shape = 'u8[8192]{0}', space=vmem, size = 0x2000, scoped, tag = 'input window, operand 1, single buffered']
    #allocation6 [shape = 's32[1]{0}', space=sflag, size = 0x4, scoped, tag = 'scoped memory for tpu_custom_call.1']
    #allocation7 [shape = 'u8[1024]{0}', space=vmem, size = 0x400, scoped, tag = 'output window, operand 0, single buffered']
    %10 = vsyncpa [#allocation3], 0
    %11 = vsyncpa [#allocation6], 0
    %12 = vsyncpa [#allocation4], 0
    // Predicated region
    $region2: #{tpu_custom_call.1} parent=1 // pred_check
      _
    $region3: #{tpu_custom_call.1} parent=1 // pred_check_branch
      %14 = sbr.rel (0) target = $region5
    $region4: #{tpu_custom_call.1} parent=1 // pred_region
      %s16 = ssub.s32 128, 128
      %17 = vsyncadd [#allocation3], %s16
      %s19 = sshll.u32 [#allocation2], 4
      %s20 = int_to_ptr.vmem [resolvable:$true] %s19
      %22 = dma.hbm_to_vmem [thread:$0]  %s0, 128, %s20, [#allocation3]
    $region5: #{tpu_custom_call.1} parent=1 // pred_fallthru
      _
    // Predicated region
    $region6: #{tpu_custom_call.1} parent=1 // pred_check
      _
    $region7: #{tpu_custom_call.1} parent=1 // pred_check_branch
      %24 = sbr.rel (0) target = $region9
    $region8: #{tpu_custom_call.1} parent=1 // pred_region
      %s26 = ssub.s32 256, 256
      %27 = vsyncadd [#allocation6], %s26
      %s28 = sshll.u32 [#allocation5], 4
      %s29 = int_to_ptr.vmem [resolvable:$true] %s28
      %34 = dma.hbm_to_vmem [thread:$0]  %s1, 256, %s29, [#allocation6], 128, 128, 8
    $region9: #{tpu_custom_call.1} parent=1 // pred_fallthru
      _
    // Predicated region
    $region10: #{tpu_custom_call.1} parent=1 // pred_check
      _
    $region11: #{tpu_custom_call.1} parent=1 // pred_check_branch
      %36 = sbr.rel (0) target = $region13
    $region12: #{tpu_custom_call.1} parent=1 // pred_region
      _
    $region13: #{tpu_custom_call.1} parent=1 // pred_fallthru
      _
    // Predicated region
    $region14: #{tpu_custom_call.1} parent=1 // pred_check
      _
    $region15: #{tpu_custom_call.1} parent=1 // pred_check_branch
      %38 = sbr.rel (0) target = $region17
    $region16: #{tpu_custom_call.1} parent=1 // pred_region
      _
    $region17: #{tpu_custom_call.1} parent=1 // pred_fallthru
      _
    // Predicated region
    $region18: #{tpu_custom_call.1} parent=1 // pred_check
      _
    $region19: #{tpu_custom_call.1} parent=1 // pred_check_branch
      %40 = sbr.rel (0) target = $region21
    $region20: #{tpu_custom_call.1} parent=1 // pred_region
      _
    $region21: #{tpu_custom_call.1} parent=1 // pred_fallthru
      _
    // Predicated region
    $region22: #{tpu_custom_call.1} parent=1 // pred_check
      _
    $region23: #{tpu_custom_call.1} parent=1 // pred_check_branch
      %42 = sbr.rel (0) target = $region25
    $region24: #{tpu_custom_call.1} parent=1 // pred_region
      %43 = dma.done [#allocation3], 128
    $region25: #{tpu_custom_call.1} parent=1 // pred_fallthru
      _
    // Predicated region
    $region26: #{tpu_custom_call.1} parent=1 // pred_check
      _
    $region27: #{tpu_custom_call.1} parent=1 // pred_check_branch
      %45 = sbr.rel (0) target = $region29
    $region28: #{tpu_custom_call.1} parent=1 // pred_region
      %46 = dma.done [#allocation6], 256
    $region29: #{tpu_custom_call.1} parent=1 // pred_fallthru
      _
    %v47 = vld [vmem:[#allocation2] sm:$0xff]
    %v48 = vld [vmem:[#allocation5] sm:$0xff]
    %v49 = vld [vmem:[#allocation5 + $0x8] sm:$0xff]
    %v50 = vld [vmem:[%s2] sm:$0x1]
    %v52 = vlaneseq
    %v53 = vshrl.u32 %v52, 7
    %v54 = vsub.s32 0, %v53
    %v55 = vrot.slane %v50, %v54
    %vm57 = vcmask 130048
    %v59 = vsel %vm57, %v47, 0
    %61 = vmatprep.subr.mxu0 0.0
    %62 = vmatpush1.msra.mxu0 0.0
    %63 = vmatprep.subr.mxu0 0.0
    %64 = vmatpush1.msra.mxu0 0.0
    %65 = vmatprep.subr.mxu0 0.0
    %66 = vmatpush1.msra.mxu0 0.0
    %67 = vmatprep.subr.mxu0 0.0
    %68 = vmatpush1.msra.mxu0 0.0
    %69 = vmatprep.subr.mxu0 0.0
    %70 = vmatpush1.msra.mxu0 0.0
    %71 = vmatprep.subr.mxu0 0.0
    %72 = vmatpush1.msra.mxu0 0.0
    %73 = vmatprep.subr.mxu0 0.0
    %74 = vmatpush1.msra.mxu0 0.0
    %75 = vmatprep.subr.mxu0 0.0
    %76 = vmatpush1.msra.mxu0 0.0
    %77 = vmatprep.subr.mxu0 0.0
    %78 = vmatpush1.msra.mxu0 0.0
    %79 = vmatprep.subr.mxu0 0.0
    %80 = vmatpush1.msra.mxu0 0.0
    %81 = vmatprep.subr.mxu0 0.0
    %82 = vmatpush1.msra.mxu0 0.0
    %83 = vmatprep.subr.mxu0 0.0
    %84 = vmatpush1.msra.mxu0 0.0
    %85 = vmatprep.subr.mxu0 0.0
    %86 = vmatpush1.msra.mxu0 0.0
    %87 = vmatprep.subr.mxu0 0.0
    %88 = vmatpush1.msra.mxu0 0.0
    %89 = vmatprep.subr.mxu0 0.0
    %90 = vmatpush1.msra.mxu0 %v49
    %91 = vmatprep.subr.mxu0 0.0
    %92 = vmatpush1.msra.mxu0 %v48
    %93 = vmatprep.subr.mxu0 0.0
    %94 = vmatpush2.msra.mxu0 0.0
    %95 = vmatprep.subr.mxu0 0.0
    %96 = vmatpush2.msra.mxu0 0.0
    %97 = vmatprep.subr.mxu0 0.0
    %98 = vmatpush2.msra.mxu0 0.0
    %99 = vmatprep.subr.mxu0 0.0
    %100 = vmatpush2.msra.mxu0 0.0
    %101 = vmatprep.subr.mxu0 0.0
    %102 = vmatpush2.msra.mxu0 0.0
    %103 = vmatprep.subr.mxu0 0.0
    %104 = vmatpush2.msra.mxu0 0.0
    %105 = vmatprep.subr.mxu0 0.0
    %106 = vmatpush2.msra.mxu0 0.0
    %107 = vmatprep.subr.mxu0 0.0
    %108 = vmatpush2.msra.mxu0 0.0
    %109 = vmatprep.subr.mxu0 0.0
    %110 = vmatpush2.msra.mxu0 0.0
    %111 = vmatprep.subr.mxu0 0.0
    %112 = vmatpush2.msra.mxu0 0.0
    %113 = vmatprep.subr.mxu0 0.0
    %114 = vmatpush2.msra.mxu0 0.0
    %115 = vmatprep.subr.mxu0 0.0
    %116 = vmatpush2.msra.mxu0 0.0
    %117 = vmatprep.subr.mxu0 0.0
    %118 = vmatpush2.msra.mxu0 0.0
    %119 = vmatprep.subr.mxu0 0.0
    %120 = vmatpush2.msra.mxu0 0.0
    %121 = vmatprep.subr.mxu0 0.0
    %122 = vmatpush2.msra.mxu0 0.0
    %123 = vmatprep.subr.mxu0 0.0
    %124 = vmatpush2.msra.mxu0 0.0
    %125 = vmatprep.mubr.f32.mxu0 0.0
    %126 = vmatmul.mubr.f32.gmra.mxu0 %v59
    %v127 = vpop.f32.mrf.mxu0
    %v128 = vadd.f32 %v55, %v127
    %v129 = vpop.f32.mrf.mxu0
    %130 = vdwg.mxu0
    %v131 = vmul.f32 %v128, 0.3
    %v132 = vmax.f32 %v128, %v131
    %v133 = vld [vmem:[%s3] sm:$0x3]
    %v134 = vld [vmem:[%s4] sm:$0x3]
    %136 = vset.pattern.permute.xlu0 0
    %137 = vperm.xlu0 %136, %v134
    %v138 = vpop.permute.xlu0 %137
    %vm140 = vcmask 261120
    %v142 = vsel %vm140, %v133, 0
    %v145 = vsel %vm140, %v132, 0
    %147 = vmatprep.subr.mxu0 0.0
    %148 = vmatpush1.xpose.msra.mxu0 0.0
    %149 = vmatprep.subr.mxu0 0.0
    %150 = vmatpush1.xpose.msra.mxu0 0.0
    %151 = vmatprep.subr.mxu0 0.0
    %152 = vmatpush1.xpose.msra.mxu0 0.0
    %153 = vmatprep.subr.mxu0 0.0
    %154 = vmatpush1.xpose.msra.mxu0 0.0
    %155 = vmatprep.subr.mxu0 0.0
    %156 = vmatpush1.xpose.msra.mxu0 0.0
    %157 = vmatprep.subr.mxu0 0.0
    %158 = vmatpush1.xpose.msra.mxu0 0.0
    %159 = vmatprep.subr.mxu0 0.0
    %160 = vmatpush1.xpose.msra.mxu0 0.0
    %161 = vmatprep.subr.mxu0 0.0
    %162 = vmatpush1.xpose.msra.mxu0 0.0
    %163 = vmatprep.subr.mxu0 0.0
    %164 = vmatpush1.xpose.msra.mxu0 0.0
    %165 = vmatprep.subr.mxu0 0.0
    %166 = vmatpush1.xpose.msra.mxu0 0.0
    %167 = vmatprep.subr.mxu0 0.0
    %168 = vmatpush1.xpose.msra.mxu0 0.0
    %169 = vmatprep.subr.mxu0 0.0
    %170 = vmatpush1.xpose.msra.mxu0 0.0
    %171 = vmatprep.subr.mxu0 0.0
    %172 = vmatpush1.xpose.msra.mxu0 0.0
    %173 = vmatprep.subr.mxu0 0.0
    %174 = vmatpush1.xpose.msra.mxu0 0.0
    %175 = vmatprep.subr.mxu0 0.0
    %176 = vmatpush1.xpose.msra.mxu0 0.0
    %177 = vmatprep.subr.mxu0 0.0
    %178 = vmatpush1.xpose.msra.mxu0 %v145
    %179 = vmatprep.subr.mxu0 0.0
    %180 = vmatpush2.xpose.msra.mxu0 0.0
    %181 = vmatprep.subr.mxu0 0.0
    %182 = vmatpush2.xpose.msra.mxu0 0.0
    %183 = vmatprep.subr.mxu0 0.0
    %184 = vmatpush2.xpose.msra.mxu0 0.0
    %185 = vmatprep.subr.mxu0 0.0
    %186 = vmatpush2.xpose.msra.mxu0 0.0
    %187 = vmatprep.subr.mxu0 0.0
    %188 = vmatpush2.xpose.msra.mxu0 0.0
    %189 = vmatprep.subr.mxu0 0.0
    %190 = vmatpush2.xpose.msra.mxu0 0.0
    %191 = vmatprep.subr.mxu0 0.0
    %192 = vmatpush2.xpose.msra.mxu0 0.0
    %193 = vmatprep.subr.mxu0 0.0
    %194 = vmatpush2.xpose.msra.mxu0 0.0
    %195 = vmatprep.subr.mxu0 0.0
    %196 = vmatpush2.xpose.msra.mxu0 0.0
    %197 = vmatprep.subr.mxu0 0.0
    %198 = vmatpush2.xpose.msra.mxu0 0.0
    %199 = vmatprep.subr.mxu0 0.0
    %200 = vmatpush2.xpose.msra.mxu0 0.0
    %201 = vmatprep.subr.mxu0 0.0
    %202 = vmatpush2.xpose.msra.mxu0 0.0
    %203 = vmatprep.subr.mxu0 0.0
    %204 = vmatpush2.xpose.msra.mxu0 0.0
    %205 = vmatprep.subr.mxu0 0.0
    %206 = vmatpush2.xpose.msra.mxu0 0.0
    %207 = vmatprep.subr.mxu0 0.0
    %208 = vmatpush2.xpose.msra.mxu0 0.0
    %209 = vmatprep.subr.mxu0 0.0
    %210 = vmatpush2.xpose.msra.mxu0 0.0
    %211 = vmatprep.mubr.f32.mxu0 0.0
    %212 = vmatmul.mubr.f32.gmra.mxu0 %v142
    %v213 = vpop.f32.mrf.mxu0
    %v214 = vadd.f32 %v138, %v213
    %v215 = vpop.f32.mrf.mxu0
    %216 = vdwg.mxu0
    %v218 = vrot.slane %v214, 7
    %v220 = vsub.f32 %v214, %v218
    %v221 = vsub.f32 0.0, %v220
    %v222 = vmul.f32 %v221, 1.442695
    %v223 = vpow.pop %v222
    %v224 = vadd.f32 %v223, 1.0
    %v225 = vrcp.pop %v224
    %v226 = vmul.f32 1.0, %v225
    %v227 = vsub.f32 1.0, %v226
    %v229 = vrot.slane %v227, 1
    %vm231 = vcmask 1040384
    %v232 = vsel %vm231, %v229, %v226
    %vm233 = vcmask 58368
    %234 = vst.msk [vmem:[#allocation7] sm:$0x3] %vm233, %v232
    // Predicated region
    $region30: #{tpu_custom_call.1} parent=1 // pred_check
      _
    $region31: #{tpu_custom_call.1} parent=1 // pred_check_branch
      %236 = sbr.rel (0) target = $region33
    $region32: #{tpu_custom_call.1} parent=1 // pred_region
      %s238 = ssub.s32 32, 32
      %239 = vsyncadd [#allocation4], %s238
      %s241 = sshll.u32 [#allocation7], 4
      %s242 = int_to_ptr.vmem [resolvable:$true] %s241
      %244 = dma.vmem_to_hbm [thread:$0]  %s242, 32, %s5, [#allocation4]
    $region33: #{tpu_custom_call.1} parent=1 // pred_fallthru
      _
    // Predicated region
    $region34: #{tpu_custom_call.1} parent=1 // pred_check
      _
    $region35: #{tpu_custom_call.1} parent=1 // pred_check_branch
      %246 = sbr.rel (0) target = $region37
    $region36: #{tpu_custom_call.1} parent=1 // pred_region
      %247 = dma.done [#allocation4], 32
    $region37: #{tpu_custom_call.1} parent=1 // pred_fallthru
      _
    %248 = vsyncpa [#allocation3], 1
    %249 = vsyncpa [#allocation6], 1
    %250 = vsyncpa [#allocation4], 1

</llo_original>
